<compile_context>
chip_gen: v7x
topology: tpu7x:2x2x1
jax: 0.10.0
libtpu: 0.0.40
codegen_flags: <defaults>
</compile_context>

<pallas_src>
import functools

import jax
import jax.numpy as jnp
from jax.experimental import pallas as pl
from jax.experimental.pallas import tpu as pltpu

GAMMA = 2.0
_LANE = 128
_SUBLANE = 8


def _round_up(x, m):
    return ((x + m - 1) // m) * m


def _row_align(itemsize):
    # native sublane packing: 8 rows for 4-byte, 16 for 2-byte, 32 for 1-byte dtypes
    return max(_SUBLANE, 32 // max(1, int(itemsize)))


def _tpu_vmem_and_cores():
    """Best-effort query of per-core VMEM bytes and TensorCore count."""
    vmem_cap = None
    cores = None
    try:
        info = pltpu.get_tpu_info()
        vmem_cap = getattr(info, "vmem_capacity_bytes", None)
        for attr in ("num_cores", "core_count", "num_tensorcores", "tensorcore_count"):
            v = getattr(info, attr, None)
            if isinstance(v, int) and v > 0:
                cores = v
                break
    except Exception:
        pass
    if cores is None:
        try:
            v = getattr(jax.devices()[0], "num_cores", None)
            if isinstance(v, int) and v > 0:
                cores = v
        except Exception:
            pass
    if vmem_cap is None:
        vmem_cap = 64 * 1024 * 1024  # conservative (v7x per-TC figure)
    if cores is None:
        # heuristic: 64 MiB-per-TC VMEM => v7x-style chip with 2 TensorCores
        cores = 2 if vmem_cap <= 96 * 1024 * 1024 else 1
    return vmem_cap, cores


def _focal_kernel(x_ref, t_ref, o_ref, *, n_total, tn, tiles_per_shard):
    s = pl.program_id(0)       # shard (parallel axis)
    ti = pl.program_id(1)      # row-tile within shard (reduction axis)

    # init the per-shard partial sum at the start of the reduction axis
    @pl.when(ti == 0)
    def _():
        o_ref[...] = jnp.zeros_like(o_ref)

    x = x_ref[...].astype(jnp.float32)          # (tn, C) f32, upcast in-register
    tgt = t_ref[...]                            # (tn, 1) int32

    # numerically stable log-sum-exp along the class (lane) axis
    m = jnp.max(x, axis=-1, keepdims=True)                          # (tn, 1)
    lse = jnp.log(jnp.sum(jnp.exp(x - m), axis=-1, keepdims=True))  # (tn, 1)

    # gather the target logit via a one-hot mask (no dynamic gather on TPU
    # vregs); all remaining focal math happens on (tn, 1) only.
    rows, cw = x.shape
    cls = jax.lax.broadcasted_iota(jnp.int32, (rows, cw), 1)
    x_t = jnp.sum(jnp.where(cls == tgt, x, 0.0), axis=-1, keepdims=True)

    logp_t = x_t - m - lse                      # (tn, 1)
    p_t = jnp.exp(logp_t)
    one_minus = 1.0 - p_t
    per_sample = -(one_minus * one_minus) * logp_t   # gamma = 2.0

    # mask rows outside the real batch (ragged last tile / clamped shard tiles);
    # the mask MUST be applied before the axis-0 sum so undefined rows never
    # reach the accumulator.
    row0 = (s * tiles_per_shard + ti) * tn
    rid = row0 + jax.lax.broadcasted_iota(jnp.int32, (rows, 1), 0)
    per_sample = jnp.where(rid < n_total, per_sample, 0.0)

    o_ref[...] += jnp.sum(per_sample, axis=0, keepdims=True)        # (1, 1)


def focal_loss(logits, targets, gamma=2.0, reduction="mean", *, block_rows=None):
    """logits: (N, C) float, targets: (N,) int class indices. Returns scalar f32."""
    assert gamma == GAMMA and reduction == "mean"
    # TODO(synk): nll_loss's class `weight` and ignore_index=-100 are not implemented.
    n, c = logits.shape
    itemsize = jnp.dtype(logits.dtype).itemsize
    cp128 = _round_up(c, _LANE)   # lane-padded width of the in-kernel f32 temporaries
    align = _row_align(itemsize)

    vmem_cap, cores = _tpu_vmem_and_cores()
    if vmem_cap >= 96 * 1024 * 1024:          # v5e / v6e: 128 MiB physical VMEM
        vmem_budget = 40 * 1024 * 1024
        vmem_limit = 64 * 1024 * 1024
    else:                                     # v7x: 64 MiB/TC, 32 MiB scoped default
        vmem_budget = 20 * 1024 * 1024
        vmem_limit = 30 * 1024 * 1024

    if block_rows is None:
        # per tile-row: 2 double-buffered native-dtype input rows + targets
        # + ~6 (tn, cp128) f32/int32 in-kernel temporaries + slack.
        per_row = 2 * c * itemsize + 6 * cp128 * 4 + 2 * 4 * 2 + 64
        tn = int(vmem_budget // per_row)
    else:
        tn = int(block_rows)
    tn = max(align, (tn // align) * align)
    tn = min(tn, 8192)                         # already well past the DMA knee
    tn = min(tn, _round_up(n, align))          # never bigger than the (aligned) batch

    num_tiles = pl.cdiv(n, tn)
    # 2-way shard only when there are really 2 TensorCores (v7x); on 1-TC chips
    # the extra axis would just serialize.
    num_shards = 2 if (cores >= 2 and num_tiles >= 2) else 1
    tiles_per_shard = pl.cdiv(num_tiles, num_shards)
    last_block = num_tiles - 1

    # Clamp overhanging shard tiles onto the last valid block so every DMA stays
    # in bounds; their contribution is zeroed by the in-kernel row-id mask.
    def row_index_map(s, t):
        return (jnp.minimum(s * tiles_per_shard + t, last_block), 0)

    t2d = targets.astype(jnp.int32).reshape(n, 1)

    kernel = functools.partial(
        _focal_kernel, n_total=n, tn=tn, tiles_per_shard=tiles_per_shard)

    cost = pl.CostEstimate(
        flops=8 * n * cp128,
        transcendentals=n * cp128 + 2 * n,
        bytes_accessed=n * c * itemsize + n * 4 + num_shards * 4,
    )

    partials = pl.pallas_call(
        kernel,
        out_shape=jax.ShapeDtypeStruct((num_shards, 1), jnp.float32),
        grid_spec=pltpu.PrefetchScalarGridSpec(
            num_scalar_prefetch=0,
            grid=(num_shards, tiles_per_shard),
            in_specs=[
                # class dim == full array extent (no padding / no HBM copy)
                pl.BlockSpec((tn, c), row_index_map),
                pl.BlockSpec((tn, 1), row_index_map),
            ],
            out_specs=pl.BlockSpec((1, 1), lambda s, t: (s, 0)),
        ),
        compiler_params=pltpu.CompilerParams(
            dimension_semantics=("parallel", "arbitrary"),
            vmem_limit_bytes=vmem_limit,
        ),
        cost_estimate=cost,
    )(logits, t2d)

    return jnp.sum(partials) / jnp.float32(n)


def focal_loss_ref(logits, targets, gamma=2.0):
    # pure-JAX reference for sanity checking
    logp = jax.nn.log_softmax(logits.astype(jnp.float32), axis=-1)
    p = jnp.exp(logp)
    focal = (1.0 - p) ** gamma * logp
    picked = jnp.take_along_axis(
        focal, targets[:, None].astype(jnp.int32), axis=-1)[:, 0]
    return jnp.mean(-picked)


if __name__ == "__main__":
    key = jax.random.PRNGKey(0)
    k1, k2, k3, k4, k5, k6 = jax.random.split(key, 6)

    # small shape matching the module: (N, C) logits, (N,) class-index targets
    n1, c1 = 8, 32
    logits1 = jax.random.normal(k1, (n1, c1), dtype=jnp.float32)
    targets1 = jax.random.randint(k2, (n1,), 0, c1, dtype=jnp.int32)
    loss1 = jax.block_until_ready(focal_loss(logits1, targets1))
    ref1 = focal_loss_ref(logits1, targets1)
    assert jnp.allclose(loss1, ref1, atol=1e-5, rtol=1e-5), (loss1, ref1)

    # ragged, multi-tile case exercising the unpadded class axis (C=50) and the
    # row-id mask on the partial trailing tile (and shard clamping on 2-TC chips)
    n2, c2 = 300, 50
    logits2 = jax.random.normal(k3, (n2, c2), dtype=jnp.float32)
    targets2 = jax.random.randint(k4, (n2,), 0, c2, dtype=jnp.int32)
    loss2 = jax.block_until_ready(focal_loss(logits2, targets2, block_rows=64))
    ref2 = focal_loss_ref(logits2, targets2)
    assert jnp.allclose(loss2, ref2, atol=1e-5, rtol=1e-5), (loss2, ref2)

    # bf16 logits: DMA'd in native dtype, upcast to f32 inside the kernel
    n3, c3 = 320, 64
    logits3 = jax.random.normal(k5, (n3, c3), dtype=jnp.bfloat16)
    targets3 = jax.random.randint(k6, (n3,), 0, c3, dtype=jnp.int32)
    loss3 = jax.block_until_ready(focal_loss(logits3, targets3))
    ref3 = focal_loss_ref(logits3, targets3)
    assert jnp.allclose(loss3, ref3, atol=1e-5, rtol=1e-5), (loss3, ref3)

    print("KERNEL_OK")
</pallas_src>

<mosaic_0001>
module attributes {stable_mosaic.version = 11 : i64} {
  func.func @_focal_kernel(%arg0: i32, %arg1: i32, %arg2: memref<8x32xf32, #tpu.memory_space<vmem>>, %arg3: memref<8x1xi32, #tpu.memory_space<vmem>>, %arg4: memref<1x1xf32, #tpu.memory_space<vmem>>) attributes {dimension_semantics = [#tpu.dimension_semantics<parallel>, #tpu.dimension_semantics<arbitrary>], iteration_bounds = array<i64: 1, 1>, scalar_prefetch = 0 : i64, scratch_operands = 0 : i64, tpu.core_type = #tpu.core_type<tc>, window_params = [{transform_indices = @transform_0, window_bounds = array<i64: 8, 32>}, {transform_indices = @transform_1, window_bounds = array<i64: 8, 1>}, {transform_indices = @transform_2, window_bounds = array<i64: 1, 1>}]} {
    %c0_i32 = arith.constant 0 : i32
    %0 = arith.cmpi eq, %arg1, %c0_i32 : i32
    %1 = arith.extui %0 : i1 to i32
    %c0_i32_0 = arith.constant 0 : i32
    %2 = arith.cmpi ne, %1, %c0_i32_0 : i32
    scf.if %2 {
      %cst_16 = arith.constant 0.000000e+00 : f32
      %44 = vector.broadcast %cst_16 : f32 to vector<1x1xf32>
      %c0_17 = arith.constant 0 : index
      %c0_18 = arith.constant 0 : index
      %45 = vector.load %arg4[%c0_17, %c0_18] : memref<1x1xf32, #tpu.memory_space<vmem>>, vector<1x1xf32>
      tpu.vector_store %arg4[%c0_17, %c0_18], %44 {strides = array<i32>} : memref<1x1xf32, #tpu.memory_space<vmem>>, vector<1x1xf32>,
    } else {
    }
    %c0 = arith.constant 0 : index
    %c0_1 = arith.constant 0 : index
    %3 = vector.load %arg2[%c0, %c0_1] : memref<8x32xf32, #tpu.memory_space<vmem>>, vector<8x32xf32>
    %c0_2 = arith.constant 0 : index
    %c0_3 = arith.constant 0 : index
    %4 = vector.load %arg3[%c0_2, %c0_3] : memref<8x1xi32, #tpu.memory_space<vmem>>, vector<8x1xi32>
    %cst = arith.constant dense<0xFF800000> : vector<8xf32>
    %5 = vector.multi_reduction <maximumf>, %3, %cst [1] : vector<8x32xf32> to vector<8xf32>
    %6 = vector.shape_cast %5 : vector<8xf32> to vector<8x1xf32>
    %7 = vector.broadcast %6 : vector<8x1xf32> to vector<8x32xf32>
    %8 = arith.subf %3, %7 : vector<8x32xf32>
    %9 = math.exp %8 : vector<8x32xf32>
    %cst_4 = arith.constant dense<0.000000e+00> : vector<8xf32>
    %10 = vector.multi_reduction <add>, %9, %cst_4 [1] : vector<8x32xf32> to vector<8xf32>
    %11 = vector.shape_cast %10 : vector<8xf32> to vector<8x1xf32>
    %12 = math.log %11 : vector<8x1xf32>
    %13 = tpu.iota {dimensions = array<i32: 1>} : vector<8x32xi32>
    %14 = vector.broadcast %4 : vector<8x1xi32> to vector<8x32xi32>
    %15 = arith.cmpi eq, %13, %14 : vector<8x32xi32>
    %cst_5 = arith.constant 0.000000e+00 : f32
    %16 = vector.broadcast %cst_5 : f32 to vector<8x32xf32>
    %17 = arith.select %15, %3, %16 : vector<8x32xi1>, vector<8x32xf32>
    %cst_6 = arith.constant dense<0.000000e+00> : vector<8xf32>
    %18 = vector.multi_reduction <add>, %17, %cst_6 [1] : vector<8x32xf32> to vector<8xf32>
    %19 = vector.shape_cast %18 : vector<8xf32> to vector<8x1xf32>
    %20 = arith.subf %19, %6 : vector<8x1xf32>
    %21 = arith.subf %20, %12 : vector<8x1xf32>
    %22 = math.exp %21 : vector<8x1xf32>
    %cst_7 = arith.constant 1.000000e+00 : f32
    %23 = vector.broadcast %cst_7 : f32 to vector<8x1xf32>
    %24 = arith.subf %23, %22 : vector<8x1xf32>
    %25 = arith.mulf %24, %24 : vector<8x1xf32>
    %cst_8 = arith.constant 0.000000e+00 : f32
    %26 = vector.broadcast %cst_8 : f32 to vector<8x1xf32>
    %27 = arith.subf %26, %25 : vector<8x1xf32>
    %28 = arith.mulf %27, %21 : vector<8x1xf32>
    %c1_i32 = arith.constant 1 : i32
    %29 = arith.muli %arg0, %c1_i32 : i32
    %30 = arith.addi %29, %arg1 : i32
    %c8_i32 = arith.constant 8 : i32
    %31 = arith.muli %30, %c8_i32 : i32
    %32 = tpu.iota {dimensions = array<i32: 0>} : vector<8x1xi32>
    %33 = vector.broadcast %31 : i32 to vector<8x1xi32>
    %34 = arith.addi %33, %32 : vector<8x1xi32>
    %c8_i32_9 = arith.constant 8 : i32
    %35 = vector.broadcast %c8_i32_9 : i32 to vector<8x1xi32>
    %36 = arith.cmpi slt, %34, %35 : vector<8x1xi32>
    %cst_10 = arith.constant 0.000000e+00 : f32
    %37 = vector.broadcast %cst_10 : f32 to vector<8x1xf32>
    %38 = arith.select %36, %28, %37 : vector<8x1xi1>, vector<8x1xf32>
    %c0_11 = arith.constant 0 : index
    %c0_12 = arith.constant 0 : index
    %39 = vector.load %arg4[%c0_11, %c0_12] : memref<1x1xf32, #tpu.memory_space<vmem>>, vector<1x1xf32>
    %cst_13 = arith.constant dense<0.000000e+00> : vector<1xf32>
    %40 = vector.multi_reduction <add>, %38, %cst_13 [0] : vector<8x1xf32> to vector<1xf32>
    %41 = vector.shape_cast %40 : vector<1xf32> to vector<1x1xf32>
    %42 = arith.addf %39, %41 : vector<1x1xf32>
    %c0_14 = arith.constant 0 : index
    %c0_15 = arith.constant 0 : index
    %43 = vector.load %arg4[%c0_14, %c0_15] : memref<1x1xf32, #tpu.memory_space<vmem>>, vector<1x1xf32>
    tpu.vector_store %arg4[%c0_14, %c0_15], %42 {strides = array<i32>} : memref<1x1xf32, #tpu.memory_space<vmem>>, vector<1x1xf32>,
    return
  }
  func.func @transform_0(%arg0: i32, %arg1: i32) -> (i32, i32) {
    %c1_i32 = arith.constant 1 : i32
    %0 = arith.muli %arg0, %c1_i32 : i32
    %1 = arith.addi %0, %arg1 : i32
    %c0_i32 = arith.constant 0 : i32
    %2 = arith.minsi %1, %c0_i32 : i32
    %c0_i32_0 = arith.constant 0 : i32
    %c0_i32_1 = arith.constant 0 : i32
    return %2, %c0_i32_0 : i32, i32
  }
  func.func @transform_1(%arg0: i32, %arg1: i32) -> (i32, i32) {
    %c1_i32 = arith.constant 1 : i32
    %0 = arith.muli %arg0, %c1_i32 : i32
    %1 = arith.addi %0, %arg1 : i32
    %c0_i32 = arith.constant 0 : i32
    %2 = arith.minsi %1, %c0_i32 : i32
    %c0_i32_0 = arith.constant 0 : i32
    %c0_i32_1 = arith.constant 0 : i32
    return %2, %c0_i32_0 : i32, i32
  }
  func.func @transform_2(%arg0: i32, %arg1: i32) -> (i32, i32) {
    %c0_i32 = arith.constant 0 : i32
    %c0_i32_0 = arith.constant 0 : i32
    return %arg0, %c0_i32 : i32, i32
  }
}

</mosaic_0001>

<llo_original>
// kernel: tpu_custom_call.1
$region0: #{tpu_custom_call.1}
  #allocation0 [shape = 'u32[]', space=smem, size = 0x4, offset = 0x4, fixed_abs, tag = 'smem constant byte address 0x4 - core index']
  #allocation1 [shape = 'u32[144,128]{1,0:T(1,128)}', space=vmem, size = 0x12000, scoped, tag = 'internal scratch']
  %s0 = inlined_call_operand.vmem [shape: f32[8,32], index: 0, kind: input, shape index: {}]
  %s1 = inlined_call_operand.vmem [shape: s32[8,1], index: 1, kind: input, shape index: {}]
  %s2 = inlined_call_operand.hbm [shape: f32[1,1], index: 2, kind: output, shape index: {}]
  %s3 = sld [smem:[#allocation0]]
  $region22: #{tpu_custom_call.1} parent=0
    _
  %s5 = ssub.s32 1, %s3
  %s6 = scalar_select 0, %s5, %s3
  $region1: #{tpu_custom_call.1} parent=0
    #allocation2 [shape = 'u8[512]{0}', space=vmem, size = 0x400, scoped, tag = 'output window, operand 0, single buffered']
    #allocation3 [shape = 's32[1]{0}', space=sflag, size = 0x4, scoped, tag = 'scoped memory for tpu_custom_call.1']
    %7 = vsyncpa [#allocation3], 0
    // Predicated region
    $region2: #{tpu_custom_call.1} parent=1 // pred_check
      _
    $region3: #{tpu_custom_call.1} parent=1 // pred_check_branch
      %9 = sbr.rel (0) target = $region5
    $region4: #{tpu_custom_call.1} parent=1 // pred_region
      %s10 = sadd.s32 0, 0
      %p11 = scmp.lt.s32.totalorder %s10, 0
      %s12 = scalar_select %p11, %s10, 0
      %p13 = scmp.lt.s32.totalorder %s12, 0
      %s14 = scalar_select %p13, %s12, 0
      %s15 = smul.addr %s14, 8
      %s16 = scalar_lea.vmem %s0, %s15
      %s17 = sadd.s32 0, 0
      %p18 = scmp.lt.s32.totalorder %s17, 0
      %s19 = scalar_select %p18, %s17, 0
    $region5: #{tpu_custom_call.1} parent=1 // pred_fallthru
      _
    // Predicated region
    $region6: #{tpu_custom_call.1} parent=1 // pred_check
      _
    $region7: #{tpu_custom_call.1} parent=1 // pred_check_branch
      %21 = sbr.rel (0) target = $region9
    $region8: #{tpu_custom_call.1} parent=1 // pred_region
      %s22 = sadd.s32 0, 0
      %p23 = scmp.lt.s32.totalorder %s22, 0
      %s24 = scalar_select %p23, %s22, 0
      %p25 = scmp.lt.s32.totalorder %s24, 0
      %s26 = scalar_select %p25, %s24, 0
      %s27 = smul.addr %s26, 8
      %s28 = scalar_lea.vmem %s1, %s27
      %s29 = sadd.s32 0, 0
      %p30 = scmp.lt.s32.totalorder %s29, 0
      %s31 = scalar_select %p30, %s29, 0
    $region9: #{tpu_custom_call.1} parent=1 // pred_fallthru
      _
    %s32 = sadd.s32 0, 0
    %p33 = scmp.lt.s32.totalorder %s32, 0
    %s34 = scalar_select %p33, %s32, 0
    %p35 = scmp.lt.s32.totalorder %s34, 0
    %s36 = scalar_select %p35, %s34, 0
    %s37 = smul.addr %s36, 8
    %s38 = scalar_lea.vmem %s0, %s37
    %s39 = sadd.s32 0, 0
    %p40 = scmp.lt.s32.totalorder %s39, 0
    %s41 = scalar_select %p40, %s39, 0
    %p42 = scmp.lt.s32.totalorder %s41, 0
    %s43 = scalar_select %p42, %s41, 0
    %s44 = smul.addr %s43, 8
    %s45 = scalar_lea.vmem %s1, %s44
    %s46 = sadd.s32 0, 0
    %p47 = scmp.lt.s32.totalorder %s46, 0
    %s48 = scalar_select %p47, %s46, 0
    %p49 = scmp.lt.s32.totalorder %s48, 0
    %s50 = scalar_select %p49, %s48, 0
    %s51 = smul.addr %s50, 8
    %s52 = scalar_lea.vmem %s0, %s51
    %s53 = sadd.s32 0, 0
    %p54 = scmp.lt.s32.totalorder %s53, 0
    %s55 = scalar_select %p54, %s53, 0
    %s56 = sadd.s32 0, 0
    %p57 = scmp.lt.s32.totalorder %s56, 0
    %s58 = scalar_select %p57, %s56, 0
    %p59 = scmp.lt.s32.totalorder %s58, 0
    %s60 = scalar_select %p59, %s58, 0
    %s61 = smul.addr %s60, 8
    %s62 = scalar_lea.vmem %s1, %s61
    %s63 = sadd.s32 0, 0
    %p64 = scmp.lt.s32.totalorder %s63, 0
    %s65 = scalar_select %p64, %s63, 0
    %p66 = scmp.eq.s32.totalorder 0, 0
    // Predicated region
    $region10: #{tpu_custom_call.1} parent=1 // pred_check
      %p67 = pneg %p66
    $region11: #{tpu_custom_call.1} parent=1 // pred_check_branch
      %69 = sbr.rel (%p67) target = $region13
    $region12: #{tpu_custom_call.1} parent=1 // pred_region
      %vm70 = vcmask 0
      %71 = vst.msk [vmem:[#allocation2] sm:$0x1] %vm70, 0.0
    $region13: #{tpu_custom_call.1} parent=1 // pred_fallthru
      _
    %v72 = vld [vmem:[%s52] sm:$0xff]
    %v73 = vld [vmem:[%s62] sm:$0xff]
    %vm74 = vcmask 261120
    %v75 = vsel %vm74, %v72, -inf
    %76 = vmax.xlane.f32.xlu0 %v75
    %v77 = vpop.xlane.xlu0 %76
    %v78 = vsub.f32 %v72, %v77
    %v79 = vmul.f32 %v78, 1.442695
    %v80 = vpow.pop %v79
    %v81 = vsel %vm74, %v80, 0.0
    %82 = vadd.xlane.f32.xlu0 %v81
    %v83 = vpop.xlane.xlu0 %82
    %v84 = vlog2.pop %v83
    %v85 = vmul.f32 %v84, 0.6931472
    %v86 = vlaneseq
    %v87 = vand.u32 %v86, 127
    %88 = vset.pattern.permute.xlu0 0
    %89 = vperm.xlu0 %88, %v73
    %v90 = vpop.permute.xlu0 %89
    %vm91 = vcmp.eq.s32.totalorder %v87, %v90
    %v92 = vsel %vm91, %v72, 0.0
    %v93 = vsel %vm74, %v92, 0.0
    %94 = vadd.xlane.f32.xlu0 %v93
    %v95 = vpop.xlane.xlu0 %94
    %v96 = vsub.f32 %v95, %v77
    %v97 = vsub.f32 %v96, %v85
    %v98 = vmul.f32 %v97, 1.442695
    %v99 = vpow.pop %v98
    %v100 = vsub.f32 1.0, %v99
    %v101 = vmul.f32 %v100, %v100
    %v102 = vsub.f32 0.0, %v101
    %v103 = vmul.f32 %v102, %v97
    %s104 = sadd.s32 0, 0
    %s105 = smul.u32 %s104, 8
    %v106 = vlaneseq
    %v107 = vshrl.u32 %v106, 7
    %v108 = vstv %s105
    %v109 = vadd.s32 %v108, %v107
    %vm110 = vcmp.lt.s32.totalorder %v109, 8
    %v111 = vsel %vm110, %v103, 0.0
    %v112 = vld [vmem:[#allocation2] sm:$0x1]
    %v113 = vrot.slane %v111, 4
    %v114 = vadd.f32 %v111, %v113
    %v115 = vrot.slane %v114, 2
    %v116 = vadd.f32 %v114, %v115
    %v117 = vrot.slane %v116, 1
    %v118 = vadd.f32 %v116, %v117
    %v119 = vadd.f32 %v112, %v118
    %vm120 = vcmask 0
    %121 = vst.msk [vmem:[#allocation2] sm:$0x1] %vm120, %v119
    // Predicated region
    $region14: #{tpu_custom_call.1} parent=1 // pred_check
      _
    $region15: #{tpu_custom_call.1} parent=1 // pred_check_branch
      %123 = sbr.rel (0) target = $region17
    $region16: #{tpu_custom_call.1} parent=1 // pred_region
      %s125 = ssub.s32 16, 16
      %126 = vsyncadd [#allocation3], %s125
      %s128 = sshll.u32 [#allocation2], 4
      %s129 = int_to_ptr.vmem [resolvable:$true] %s128
      %131 = dma.vmem_to_hbm [thread:$0]  %s129, 16, %s2, [#allocation3]
    $region17: #{tpu_custom_call.1} parent=1 // pred_fallthru
      _
    // Predicated region
    $region18: #{tpu_custom_call.1} parent=1 // pred_check
      _
    $region19: #{tpu_custom_call.1} parent=1 // pred_check_branch
      %133 = sbr.rel (0) target = $region21
    $region20: #{tpu_custom_call.1} parent=1 // pred_region
      %134 = dma.done [#allocation3], 16
    $region21: #{tpu_custom_call.1} parent=1 // pred_fallthru
      _
    %135 = vsyncpa [#allocation3], 1

</llo_original>
